<compile_context>
chip_gen: v5e
topology: v5e:2x2
jax: 0.10.0
libtpu: 0.0.40
codegen_flags: <defaults>
</compile_context>

<pallas_src>
import functools

import jax
import jax.numpy as jnp
from jax.experimental import pallas as pl
from jax.experimental.pallas import tpu as pltpu


def _lstm_kernel(ids_ref, table_ref, w_ih_ref, w_hh_ref, b_ref,
                 w_fc_ref, b_fc_ref, h0_ref, c0_ref,
                 logits_ref, hn_ref, cn_ref,
                 *, seq_len, batch, hidden):
    S, B, H = seq_len, batch, hidden
    V_pad, _ = table_ref.shape

    # --- In-kernel embedding gather: one-hot @ table on the MXU (bf16). ---
    ids = ids_ref[...]                                          # (S*B, 1) int32
    onehot = (ids == jax.lax.broadcasted_iota(
        jnp.int32, (S * B, V_pad), 1)).astype(jnp.bfloat16)     # (S*B, V_pad)
    embs = jnp.dot(onehot, table_ref[...],
                   preferred_element_type=jnp.float32
                   ).astype(jnp.bfloat16)                       # (S*B, E)

    # --- Batched input projection for all time steps (off the serial path). ---
    # Kept as a value (~16 vregs); sliced statically inside the unrolled loop.
    xp = jnp.dot(embs, w_ih_ref[...],
                 preferred_element_type=jnp.float32) + b_ref[...]   # (S*B, 4H)

    w_hh = w_hh_ref[...]                                        # (H, 4H) bf16

    h = h0_ref[...]                                             # (B, H) f32
    c = c0_ref[...]                                             # (B, H) f32

    # Fully unrolled recurrence. Static row slices of xp are sublane-aligned
    # (B == 16 is a multiple of 8).
    for t in range(S):
        gates = xp[t * B:(t + 1) * B, :] + jnp.dot(
            h.astype(jnp.bfloat16), w_hh,
            preferred_element_type=jnp.float32)                 # (B, 4H) f32
        # Single-tanh gate form (i/f/o columns pre-scaled by 0.5 in wrapper):
        #   tanh(gates[:, ifo]) == tanh(z/2); sigmoid(z) == 0.5*tanh(z/2)+0.5
        #   tanh(gates[:, g])   == tanh(z_g)
        tg = jnp.tanh(gates)                                    # one EUP pass
        sg = 0.5 * tg + 0.5                                     # VALU affine
        i_g = sg[:, 0 * H:1 * H]
        f_g = sg[:, 1 * H:2 * H]
        g_g = tg[:, 2 * H:3 * H]
        o_g = sg[:, 3 * H:4 * H]
        c = f_g * c + i_g * g_g
        h = o_g * jnp.tanh(c)

    hn_ref[...] = h
    cn_ref[...] = c
    # Dropout is identity at inference; fc applied to the last time step's
    # output (== fc(out)[:, -1]). Output tile is lane-dense (128 wide,
    # columns 2.. are zero and sliced off in the wrapper).
    logits_ref[...] = (jnp.dot(h, w_fc_ref[...],
                               preferred_element_type=jnp.float32)
                       + b_fc_ref[...])


def lstm_sentiment_forward(params, x, hidden):
    h0, c0 = hidden                                    # each (1, B, H)
    h0 = h0[0].astype(jnp.float32)
    c0 = c0[0].astype(jnp.float32)

    B, S = x.shape
    emb_table = params["embedding"]                    # (V, E)
    V, E = emb_table.shape
    H = h0.shape[-1]
    LANE = 128
    V_pad = ((V + LANE - 1) // LANE) * LANE

    # Embedding table padded to a lane multiple of rows, bf16 for the MXU.
    table = jnp.zeros((V_pad, E), jnp.bfloat16).at[:V].set(
        emb_table.astype(jnp.bfloat16))

    # Token ids in time-major flattened order (row r -> t = r // B, b = r % B),
    # so the in-kernel one-hot gather directly yields the sequence-major block.
    ids_tm = jnp.transpose(x.astype(jnp.int32), (1, 0)).reshape(S * B, 1)

    # Gate column scaling for the single-tanh formulation: i/f/o columns * 0.5
    # (exact, a power of two), g columns untouched. PyTorch gate order: i,f,g,o.
    gate_scale = jnp.concatenate([
        jnp.full((2 * H,), 0.5, jnp.float32),
        jnp.ones((H,), jnp.float32),
        jnp.full((H,), 0.5, jnp.float32),
    ])
    w_ih = (jnp.transpose(params["w_ih"]) * gate_scale).astype(jnp.bfloat16)  # (E, 4H)
    w_hh = (jnp.transpose(params["w_hh"]) * gate_scale).astype(jnp.bfloat16)  # (H, 4H)
    b = ((params["b_ih"] + params["b_hh"]) * gate_scale).reshape(1, 4 * H)    # f32

    # fc padded to a lane-dense 128-wide output; real logits live in cols 0:2.
    w_fc = jnp.zeros((H, LANE), jnp.float32).at[:, :2].set(
        jnp.transpose(params["w_fc"]))
    b_fc = jnp.zeros((1, LANE), jnp.float32).at[:, :2].set(
        params["b_fc"].reshape(1, 2))

    vmem = pl.BlockSpec(memory_space=pltpu.MemorySpace.VMEM)

    logits_pad, h_n, c_n = pl.pallas_call(
        functools.partial(_lstm_kernel, seq_len=S, batch=B, hidden=H),
        out_shape=(jax.ShapeDtypeStruct((B, LANE), jnp.float32),
                   jax.ShapeDtypeStruct((B, H), jnp.float32),
                   jax.ShapeDtypeStruct((B, H), jnp.float32)),
        in_specs=[vmem] * 9,
        out_specs=(vmem, vmem, vmem),
    )(ids_tm, table, w_ih, w_hh, b, w_fc, b_fc, h0, c0)

    return logits_pad[:, :2], (h_n[None], c_n[None])


def reference_forward(params, x, hidden):
    """Plain-JAX f32 reference matching PyTorch LSTM semantics (eval mode)."""
    h, c = hidden
    h = h[0]
    c = c[0]
    embs = jnp.take(params["embedding"], x, axis=0)    # (B, S, E)
    H = h.shape[-1]
    w_ih, w_hh = params["w_ih"], params["w_hh"]
    b = params["b_ih"] + params["b_hh"]

    def step(carry, x_t):
        h, c = carry
        gates = x_t @ w_ih.T + h @ w_hh.T + b
        i = jax.nn.sigmoid(gates[:, 0 * H:1 * H])
        f = jax.nn.sigmoid(gates[:, 1 * H:2 * H])
        g = jnp.tanh(gates[:, 2 * H:3 * H])
        o = jax.nn.sigmoid(gates[:, 3 * H:4 * H])
        c = f * c + i * g
        h = o * jnp.tanh(c)
        return (h, c), h

    (h, c), outs = jax.lax.scan(step, (h, c), jnp.transpose(embs, (1, 0, 2)))
    out = outs[-1] @ params["w_fc"].T + params["b_fc"]  # == fc(out)[:, -1]
    return out, (h[None], c[None])


def init_params(key, vocab_size, embedding_dim, hidden_dim):
    ks = jax.random.split(key, 7)
    s = 0.1
    emb = jax.random.normal(ks[0], (vocab_size, embedding_dim), jnp.float32) * s
    emb = emb.at[0].set(0.0)                           # padding_idx=0
    return dict(
        embedding=emb,
        w_ih=jax.random.normal(ks[1], (4 * hidden_dim, embedding_dim), jnp.float32) * s,
        w_hh=jax.random.normal(ks[2], (4 * hidden_dim, hidden_dim), jnp.float32) * s,
        b_ih=jax.random.normal(ks[3], (4 * hidden_dim,), jnp.float32) * s,
        b_hh=jax.random.normal(ks[4], (4 * hidden_dim,), jnp.float32) * s,
        w_fc=jax.random.normal(ks[5], (2, hidden_dim), jnp.float32) * s,
        b_fc=jax.random.normal(ks[6], (2,), jnp.float32) * s,
    )


if __name__ == "__main__":
    VOCAB, EMB, HID = 100, 64, 32
    BATCH, SEQ = 16, 8                                 # batch_size=16, hidden=32 per module

    key = jax.random.PRNGKey(0)
    pkey, xkey = jax.random.split(key)
    params = init_params(pkey, VOCAB, EMB, HID)
    x = jax.random.randint(xkey, (BATCH, SEQ), 0, VOCAB, dtype=jnp.int32)
    hidden = (jnp.zeros((1, BATCH, HID), jnp.float32),  # init_hidden()
              jnp.zeros((1, BATCH, HID), jnp.float32))

    logits, (h_n, c_n) = lstm_sentiment_forward(params, x, hidden)
    jax.block_until_ready((logits, h_n, c_n))

    ref_logits, (ref_h, ref_c) = reference_forward(params, x, hidden)
    assert logits.shape == (BATCH, 2)
    assert h_n.shape == (1, BATCH, HID) and c_n.shape == (1, BATCH, HID)
    # Tolerances account for bf16 MXU inputs (f32 accumulation) vs f32 reference.
    assert jnp.allclose(logits, ref_logits, atol=3e-3, rtol=3e-2)
    assert jnp.allclose(h_n, ref_h, atol=3e-3, rtol=3e-2)
    assert jnp.allclose(c_n, ref_c, atol=3e-3, rtol=3e-2)

    print("KERNEL_OK")
</pallas_src>

<mosaic_0001>
module attributes {stable_mosaic.version = 11 : i64} {
  func.func @_lstm_kernel(%arg0: memref<128x1xi32, #tpu.memory_space<vmem>>, %arg1: memref<128x64xbf16, #tpu.memory_space<vmem>>, %arg2: memref<64x128xbf16, #tpu.memory_space<vmem>>, %arg3: memref<32x128xbf16, #tpu.memory_space<vmem>>, %arg4: memref<1x128xf32, #tpu.memory_space<vmem>>, %arg5: memref<32x128xf32, #tpu.memory_space<vmem>>, %arg6: memref<1x128xf32, #tpu.memory_space<vmem>>, %arg7: memref<16x32xf32, #tpu.memory_space<vmem>>, %arg8: memref<16x32xf32, #tpu.memory_space<vmem>>, %arg9: memref<16x128xf32, #tpu.memory_space<vmem>>, %arg10: memref<16x32xf32, #tpu.memory_space<vmem>>, %arg11: memref<16x32xf32, #tpu.memory_space<vmem>>) attributes {dimension_semantics = [], scalar_prefetch = 0 : i64, scratch_operands = 0 : i64, tpu.core_type = #tpu.core_type<tc>} {
    %c0 = arith.constant 0 : index
    %c0_0 = arith.constant 0 : index
    %0 = vector.load %arg0[%c0, %c0_0] : memref<128x1xi32, #tpu.memory_space<vmem>>, vector<128x1xi32>
    %1 = tpu.iota {dimensions = array<i32: 1>} : vector<128x128xi32>
    %2 = vector.broadcast %0 : vector<128x1xi32> to vector<128x128xi32>
    %3 = arith.cmpi eq, %2, %1 : vector<128x128xi32>
    %4 = arith.extui %3 : vector<128x128xi1> to vector<128x128xi32>
    %5 = arith.sitofp %4 : vector<128x128xi32> to vector<128x128xf32>
    %6 = arith.truncf %5 : vector<128x128xf32> to vector<128x128xbf16>
    %c0_1 = arith.constant 0 : index
    %c0_2 = arith.constant 0 : index
    %7 = vector.load %arg1[%c0_1, %c0_2] : memref<128x64xbf16, #tpu.memory_space<vmem>>, vector<128x64xbf16>
    %cst = arith.constant dense<0.000000e+00> : vector<128x64xf32>
    %8 = tpu.matmul %6, %7, %cst {dimension_numbers = #tpu.dot_dimension_numbers<[1], [0], [0], [1], [0, 0, 1, 1], [], []>} : vector<128x128xbf16>, vector<128x64xbf16>, vector<128x64xf32> -> vector<128x64xf32>
    %9 = arith.truncf %8 : vector<128x64xf32> to vector<128x64xbf16>
    %c0_3 = arith.constant 0 : index
    %c0_4 = arith.constant 0 : index
    %10 = vector.load %arg2[%c0_3, %c0_4] : memref<64x128xbf16, #tpu.memory_space<vmem>>, vector<64x128xbf16>
    %cst_5 = arith.constant dense<0.000000e+00> : vector<128x128xf32>
    %11 = tpu.matmul %9, %10, %cst_5 {dimension_numbers = #tpu.dot_dimension_numbers<[1], [0], [0], [1], [0, 0, 1, 1], [], []>} : vector<128x64xbf16>, vector<64x128xbf16>, vector<128x128xf32> -> vector<128x128xf32>
    %c0_6 = arith.constant 0 : index
    %c0_7 = arith.constant 0 : index
    %12 = vector.load %arg4[%c0_6, %c0_7] : memref<1x128xf32, #tpu.memory_space<vmem>>, vector<1x128xf32>
    %13 = vector.broadcast %12 : vector<1x128xf32> to vector<128x128xf32>
    %14 = arith.addf %11, %13 : vector<128x128xf32>
    %c0_8 = arith.constant 0 : index
    %c0_9 = arith.constant 0 : index
    %15 = vector.load %arg3[%c0_8, %c0_9] : memref<32x128xbf16, #tpu.memory_space<vmem>>, vector<32x128xbf16>
    %c0_10 = arith.constant 0 : index
    %c0_11 = arith.constant 0 : index
    %16 = vector.load %arg7[%c0_10, %c0_11] : memref<16x32xf32, #tpu.memory_space<vmem>>, vector<16x32xf32>
    %c0_12 = arith.constant 0 : index
    %c0_13 = arith.constant 0 : index
    %17 = vector.load %arg8[%c0_12, %c0_13] : memref<16x32xf32, #tpu.memory_space<vmem>>, vector<16x32xf32>
    %18 = vector.extract_strided_slice %14 {offsets = [0, 0], sizes = [16, 128], strides = [1, 1]} : vector<128x128xf32> to vector<16x128xf32>
    %19 = arith.truncf %16 : vector<16x32xf32> to vector<16x32xbf16>
    %cst_14 = arith.constant dense<0.000000e+00> : vector<16x128xf32>
    %20 = tpu.matmul %19, %15, %cst_14 {dimension_numbers = #tpu.dot_dimension_numbers<[1], [0], [0], [1], [0, 0, 1, 1], [], []>} : vector<16x32xbf16>, vector<32x128xbf16>, vector<16x128xf32> -> vector<16x128xf32>
    %21 = arith.addf %18, %20 : vector<16x128xf32>
    %22 = math.tanh %21 : vector<16x128xf32>
    %cst_15 = arith.constant 5.000000e-01 : f32
    %23 = vector.broadcast %cst_15 : f32 to vector<16x128xf32>
    %24 = arith.mulf %23, %22 : vector<16x128xf32>
    %cst_16 = arith.constant 5.000000e-01 : f32
    %25 = vector.broadcast %cst_16 : f32 to vector<16x128xf32>
    %26 = arith.addf %24, %25 : vector<16x128xf32>
    %27 = vector.extract_strided_slice %26 {offsets = [0, 0], sizes = [16, 32], strides = [1, 1]} : vector<16x128xf32> to vector<16x32xf32>
    %28 = vector.extract_strided_slice %26 {offsets = [0, 32], sizes = [16, 32], strides = [1, 1]} : vector<16x128xf32> to vector<16x32xf32>
    %29 = vector.extract_strided_slice %22 {offsets = [0, 64], sizes = [16, 32], strides = [1, 1]} : vector<16x128xf32> to vector<16x32xf32>
    %30 = vector.extract_strided_slice %26 {offsets = [0, 96], sizes = [16, 32], strides = [1, 1]} : vector<16x128xf32> to vector<16x32xf32>
    %31 = arith.mulf %28, %17 : vector<16x32xf32>
    %32 = arith.mulf %27, %29 : vector<16x32xf32>
    %33 = arith.addf %31, %32 : vector<16x32xf32>
    %34 = math.tanh %33 : vector<16x32xf32>
    %35 = arith.mulf %30, %34 : vector<16x32xf32>
    %36 = vector.extract_strided_slice %14 {offsets = [16, 0], sizes = [16, 128], strides = [1, 1]} : vector<128x128xf32> to vector<16x128xf32>
    %37 = arith.truncf %35 : vector<16x32xf32> to vector<16x32xbf16>
    %cst_17 = arith.constant dense<0.000000e+00> : vector<16x128xf32>
    %38 = tpu.matmul %37, %15, %cst_17 {dimension_numbers = #tpu.dot_dimension_numbers<[1], [0], [0], [1], [0, 0, 1, 1], [], []>} : vector<16x32xbf16>, vector<32x128xbf16>, vector<16x128xf32> -> vector<16x128xf32>
    %39 = arith.addf %36, %38 : vector<16x128xf32>
    %40 = math.tanh %39 : vector<16x128xf32>
    %cst_18 = arith.constant 5.000000e-01 : f32
    %41 = vector.broadcast %cst_18 : f32 to vector<16x128xf32>
    %42 = arith.mulf %41, %40 : vector<16x128xf32>
    %cst_19 = arith.constant 5.000000e-01 : f32
    %43 = vector.broadcast %cst_19 : f32 to vector<16x128xf32>
    %44 = arith.addf %42, %43 : vector<16x128xf32>
    %45 = vector.extract_strided_slice %44 {offsets = [0, 0], sizes = [16, 32], strides = [1, 1]} : vector<16x128xf32> to vector<16x32xf32>
    %46 = vector.extract_strided_slice %44 {offsets = [0, 32], sizes = [16, 32], strides = [1, 1]} : vector<16x128xf32> to vector<16x32xf32>
    %47 = vector.extract_strided_slice %40 {offsets = [0, 64], sizes = [16, 32], strides = [1, 1]} : vector<16x128xf32> to vector<16x32xf32>
    %48 = vector.extract_strided_slice %44 {offsets = [0, 96], sizes = [16, 32], strides = [1, 1]} : vector<16x128xf32> to vector<16x32xf32>
    %49 = arith.mulf %46, %33 : vector<16x32xf32>
    %50 = arith.mulf %45, %47 : vector<16x32xf32>
    %51 = arith.addf %49, %50 : vector<16x32xf32>
    %52 = math.tanh %51 : vector<16x32xf32>
    %53 = arith.mulf %48, %52 : vector<16x32xf32>
    %54 = vector.extract_strided_slice %14 {offsets = [32, 0], sizes = [16, 128], strides = [1, 1]} : vector<128x128xf32> to vector<16x128xf32>
    %55 = arith.truncf %53 : vector<16x32xf32> to vector<16x32xbf16>
    %cst_20 = arith.constant dense<0.000000e+00> : vector<16x128xf32>
    %56 = tpu.matmul %55, %15, %cst_20 {dimension_numbers = #tpu.dot_dimension_numbers<[1], [0], [0], [1], [0, 0, 1, 1], [], []>} : vector<16x32xbf16>, vector<32x128xbf16>, vector<16x128xf32> -> vector<16x128xf32>
    %57 = arith.addf %54, %56 : vector<16x128xf32>
    %58 = math.tanh %57 : vector<16x128xf32>
    %cst_21 = arith.constant 5.000000e-01 : f32
    %59 = vector.broadcast %cst_21 : f32 to vector<16x128xf32>
    %60 = arith.mulf %59, %58 : vector<16x128xf32>
    %cst_22 = arith.constant 5.000000e-01 : f32
    %61 = vector.broadcast %cst_22 : f32 to vector<16x128xf32>
    %62 = arith.addf %60, %61 : vector<16x128xf32>
    %63 = vector.extract_strided_slice %62 {offsets = [0, 0], sizes = [16, 32], strides = [1, 1]} : vector<16x128xf32> to vector<16x32xf32>
    %64 = vector.extract_strided_slice %62 {offsets = [0, 32], sizes = [16, 32], strides = [1, 1]} : vector<16x128xf32> to vector<16x32xf32>
    %65 = vector.extract_strided_slice %58 {offsets = [0, 64], sizes = [16, 32], strides = [1, 1]} : vector<16x128xf32> to vector<16x32xf32>
    %66 = vector.extract_strided_slice %62 {offsets = [0, 96], sizes = [16, 32], strides = [1, 1]} : vector<16x128xf32> to vector<16x32xf32>
    %67 = arith.mulf %64, %51 : vector<16x32xf32>
    %68 = arith.mulf %63, %65 : vector<16x32xf32>
    %69 = arith.addf %67, %68 : vector<16x32xf32>
    %70 = math.tanh %69 : vector<16x32xf32>
    %71 = arith.mulf %66, %70 : vector<16x32xf32>
    %72 = vector.extract_strided_slice %14 {offsets = [48, 0], sizes = [16, 128], strides = [1, 1]} : vector<128x128xf32> to vector<16x128xf32>
    %73 = arith.truncf %71 : vector<16x32xf32> to vector<16x32xbf16>
    %cst_23 = arith.constant dense<0.000000e+00> : vector<16x128xf32>
    %74 = tpu.matmul %73, %15, %cst_23 {dimension_numbers = #tpu.dot_dimension_numbers<[1], [0], [0], [1], [0, 0, 1, 1], [], []>} : vector<16x32xbf16>, vector<32x128xbf16>, vector<16x128xf32> -> vector<16x128xf32>
    %75 = arith.addf %72, %74 : vector<16x128xf32>
    %76 = math.tanh %75 : vector<16x128xf32>
    %cst_24 = arith.constant 5.000000e-01 : f32
    %77 = vector.broadcast %cst_24 : f32 to vector<16x128xf32>
    %78 = arith.mulf %77, %76 : vector<16x128xf32>
    %cst_25 = arith.constant 5.000000e-01 : f32
    %79 = vector.broadcast %cst_25 : f32 to vector<16x128xf32>
    %80 = arith.addf %78, %79 : vector<16x128xf32>
    %81 = vector.extract_strided_slice %80 {offsets = [0, 0], sizes = [16, 32], strides = [1, 1]} : vector<16x128xf32> to vector<16x32xf32>
    %82 = vector.extract_strided_slice %80 {offsets = [0, 32], sizes = [16, 32], strides = [1, 1]} : vector<16x128xf32> to vector<16x32xf32>
    %83 = vector.extract_strided_slice %76 {offsets = [0, 64], sizes = [16, 32], strides = [1, 1]} : vector<16x128xf32> to vector<16x32xf32>
    %84 = vector.extract_strided_slice %80 {offsets = [0, 96], sizes = [16, 32], strides = [1, 1]} : vector<16x128xf32> to vector<16x32xf32>
    %85 = arith.mulf %82, %69 : vector<16x32xf32>
    %86 = arith.mulf %81, %83 : vector<16x32xf32>
    %87 = arith.addf %85, %86 : vector<16x32xf32>
    %88 = math.tanh %87 : vector<16x32xf32>
    %89 = arith.mulf %84, %88 : vector<16x32xf32>
    %90 = vector.extract_strided_slice %14 {offsets = [64, 0], sizes = [16, 128], strides = [1, 1]} : vector<128x128xf32> to vector<16x128xf32>
    %91 = arith.truncf %89 : vector<16x32xf32> to vector<16x32xbf16>
    %cst_26 = arith.constant dense<0.000000e+00> : vector<16x128xf32>
    %92 = tpu.matmul %91, %15, %cst_26 {dimension_numbers = #tpu.dot_dimension_numbers<[1], [0], [0], [1], [0, 0, 1, 1], [], []>} : vector<16x32xbf16>, vector<32x128xbf16>, vector<16x128xf32> -> vector<16x128xf32>
    %93 = arith.addf %90, %92 : vector<16x128xf32>
    %94 = math.tanh %93 : vector<16x128xf32>
    %cst_27 = arith.constant 5.000000e-01 : f32
    %95 = vector.broadcast %cst_27 : f32 to vector<16x128xf32>
    %96 = arith.mulf %95, %94 : vector<16x128xf32>
    %cst_28 = arith.constant 5.000000e-01 : f32
    %97 = vector.broadcast %cst_28 : f32 to vector<16x128xf32>
    %98 = arith.addf %96, %97 : vector<16x128xf32>
    %99 = vector.extract_strided_slice %98 {offsets = [0, 0], sizes = [16, 32], strides = [1, 1]} : vector<16x128xf32> to vector<16x32xf32>
    %100 = vector.extract_strided_slice %98 {offsets = [0, 32], sizes = [16, 32], strides = [1, 1]} : vector<16x128xf32> to vector<16x32xf32>
    %101 = vector.extract_strided_slice %94 {offsets = [0, 64], sizes = [16, 32], strides = [1, 1]} : vector<16x128xf32> to vector<16x32xf32>
    %102 = vector.extract_strided_slice %98 {offsets = [0, 96], sizes = [16, 32], strides = [1, 1]} : vector<16x128xf32> to vector<16x32xf32>
    %103 = arith.mulf %100, %87 : vector<16x32xf32>
    %104 = arith.mulf %99, %101 : vector<16x32xf32>
    %105 = arith.addf %103, %104 : vector<16x32xf32>
    %106 = math.tanh %105 : vector<16x32xf32>
    %107 = arith.mulf %102, %106 : vector<16x32xf32>
    %108 = vector.extract_strided_slice %14 {offsets = [80, 0], sizes = [16, 128], strides = [1, 1]} : vector<128x128xf32> to vector<16x128xf32>
    %109 = arith.truncf %107 : vector<16x32xf32> to vector<16x32xbf16>
    %cst_29 = arith.constant dense<0.000000e+00> : vector<16x128xf32>
    %110 = tpu.matmul %109, %15, %cst_29 {dimension_numbers = #tpu.dot_dimension_numbers<[1], [0], [0], [1], [0, 0, 1, 1], [], []>} : vector<16x32xbf16>, vector<32x128xbf16>, vector<16x128xf32> -> vector<16x128xf32>
    %111 = arith.addf %108, %110 : vector<16x128xf32>
    %112 = math.tanh %111 : vector<16x128xf32>
    %cst_30 = arith.constant 5.000000e-01 : f32
    %113 = vector.broadcast %cst_30 : f32 to vector<16x128xf32>
    %114 = arith.mulf %113, %112 : vector<16x128xf32>
    %cst_31 = arith.constant 5.000000e-01 : f32
    %115 = vector.broadcast %cst_31 : f32 to vector<16x128xf32>
    %116 = arith.addf %114, %115 : vector<16x128xf32>
    %117 = vector.extract_strided_slice %116 {offsets = [0, 0], sizes = [16, 32], strides = [1, 1]} : vector<16x128xf32> to vector<16x32xf32>
    %118 = vector.extract_strided_slice %116 {offsets = [0, 32], sizes = [16, 32], strides = [1, 1]} : vector<16x128xf32> to vector<16x32xf32>
    %119 = vector.extract_strided_slice %112 {offsets = [0, 64], sizes = [16, 32], strides = [1, 1]} : vector<16x128xf32> to vector<16x32xf32>
    %120 = vector.extract_strided_slice %116 {offsets = [0, 96], sizes = [16, 32], strides = [1, 1]} : vector<16x128xf32> to vector<16x32xf32>
    %121 = arith.mulf %118, %105 : vector<16x32xf32>
    %122 = arith.mulf %117, %119 : vector<16x32xf32>
    %123 = arith.addf %121, %122 : vector<16x32xf32>
    %124 = math.tanh %123 : vector<16x32xf32>
    %125 = arith.mulf %120, %124 : vector<16x32xf32>
    %126 = vector.extract_strided_slice %14 {offsets = [96, 0], sizes = [16, 128], strides = [1, 1]} : vector<128x128xf32> to vector<16x128xf32>
    %127 = arith.truncf %125 : vector<16x32xf32> to vector<16x32xbf16>
    %cst_32 = arith.constant dense<0.000000e+00> : vector<16x128xf32>
    %128 = tpu.matmul %127, %15, %cst_32 {dimension_numbers = #tpu.dot_dimension_numbers<[1], [0], [0], [1], [0, 0, 1, 1], [], []>} : vector<16x32xbf16>, vector<32x128xbf16>, vector<16x128xf32> -> vector<16x128xf32>
    %129 = arith.addf %126, %128 : vector<16x128xf32>
    %130 = math.tanh %129 : vector<16x128xf32>
    %cst_33 = arith.constant 5.000000e-01 : f32
    %131 = vector.broadcast %cst_33 : f32 to vector<16x128xf32>
    %132 = arith.mulf %131, %130 : vector<16x128xf32>
    %cst_34 = arith.constant 5.000000e-01 : f32
    %133 = vector.broadcast %cst_34 : f32 to vector<16x128xf32>
    %134 = arith.addf %132, %133 : vector<16x128xf32>
    %135 = vector.extract_strided_slice %134 {offsets = [0, 0], sizes = [16, 32], strides = [1, 1]} : vector<16x128xf32> to vector<16x32xf32>
    %136 = vector.extract_strided_slice %134 {offsets = [0, 32], sizes = [16, 32], strides = [1, 1]} : vector<16x128xf32> to vector<16x32xf32>
    %137 = vector.extract_strided_slice %130 {offsets = [0, 64], sizes = [16, 32], strides = [1, 1]} : vector<16x128xf32> to vector<16x32xf32>
    %138 = vector.extract_strided_slice %134 {offsets = [0, 96], sizes = [16, 32], strides = [1, 1]} : vector<16x128xf32> to vector<16x32xf32>
    %139 = arith.mulf %136, %123 : vector<16x32xf32>
    %140 = arith.mulf %135, %137 : vector<16x32xf32>
    %141 = arith.addf %139, %140 : vector<16x32xf32>
    %142 = math.tanh %141 : vector<16x32xf32>
    %143 = arith.mulf %138, %142 : vector<16x32xf32>
    %144 = vector.extract_strided_slice %14 {offsets = [112, 0], sizes = [16, 128], strides = [1, 1]} : vector<128x128xf32> to vector<16x128xf32>
    %145 = arith.truncf %143 : vector<16x32xf32> to vector<16x32xbf16>
    %cst_35 = arith.constant dense<0.000000e+00> : vector<16x128xf32>
    %146 = tpu.matmul %145, %15, %cst_35 {dimension_numbers = #tpu.dot_dimension_numbers<[1], [0], [0], [1], [0, 0, 1, 1], [], []>} : vector<16x32xbf16>, vector<32x128xbf16>, vector<16x128xf32> -> vector<16x128xf32>
    %147 = arith.addf %144, %146 : vector<16x128xf32>
    %148 = math.tanh %147 : vector<16x128xf32>
    %cst_36 = arith.constant 5.000000e-01 : f32
    %149 = vector.broadcast %cst_36 : f32 to vector<16x128xf32>
    %150 = arith.mulf %149, %148 : vector<16x128xf32>
    %cst_37 = arith.constant 5.000000e-01 : f32
    %151 = vector.broadcast %cst_37 : f32 to vector<16x128xf32>
    %152 = arith.addf %150, %151 : vector<16x128xf32>
    %153 = vector.extract_strided_slice %152 {offsets = [0, 0], sizes = [16, 32], strides = [1, 1]} : vector<16x128xf32> to vector<16x32xf32>
    %154 = vector.extract_strided_slice %152 {offsets = [0, 32], sizes = [16, 32], strides = [1, 1]} : vector<16x128xf32> to vector<16x32xf32>
    %155 = vector.extract_strided_slice %148 {offsets = [0, 64], sizes = [16, 32], strides = [1, 1]} : vector<16x128xf32> to vector<16x32xf32>
    %156 = vector.extract_strided_slice %152 {offsets = [0, 96], sizes = [16, 32], strides = [1, 1]} : vector<16x128xf32> to vector<16x32xf32>
    %157 = arith.mulf %154, %141 : vector<16x32xf32>
    %158 = arith.mulf %153, %155 : vector<16x32xf32>
    %159 = arith.addf %157, %158 : vector<16x32xf32>
    %160 = math.tanh %159 : vector<16x32xf32>
    %161 = arith.mulf %156, %160 : vector<16x32xf32>
    %c0_38 = arith.constant 0 : index
    %c0_39 = arith.constant 0 : index
    %162 = vector.load %arg10[%c0_38, %c0_39] : memref<16x32xf32, #tpu.memory_space<vmem>>, vector<16x32xf32>
    tpu.vector_store %arg10[%c0_38, %c0_39], %161 {strides = array<i32>} : memref<16x32xf32, #tpu.memory_space<vmem>>, vector<16x32xf32>,
    %c0_40 = arith.constant 0 : index
    %c0_41 = arith.constant 0 : index
    %163 = vector.load %arg11[%c0_40, %c0_41] : memref<16x32xf32, #tpu.memory_space<vmem>>, vector<16x32xf32>
    tpu.vector_store %arg11[%c0_40, %c0_41], %159 {strides = array<i32>} : memref<16x32xf32, #tpu.memory_space<vmem>>, vector<16x32xf32>,
    %c0_42 = arith.constant 0 : index
    %c0_43 = arith.constant 0 : index
    %164 = vector.load %arg5[%c0_42, %c0_43] : memref<32x128xf32, #tpu.memory_space<vmem>>, vector<32x128xf32>
    %cst_44 = arith.constant dense<0.000000e+00> : vector<16x128xf32>
    %165 = tpu.matmul %161, %164, %cst_44 {dimension_numbers = #tpu.dot_dimension_numbers<[1], [0], [0], [1], [0, 0, 1, 1], [], []>} : vector<16x32xf32>, vector<32x128xf32>, vector<16x128xf32> -> vector<16x128xf32>
    %c0_45 = arith.constant 0 : index
    %c0_46 = arith.constant 0 : index
    %166 = vector.load %arg6[%c0_45, %c0_46] : memref<1x128xf32, #tpu.memory_space<vmem>>, vector<1x128xf32>
    %167 = vector.broadcast %166 : vector<1x128xf32> to vector<16x128xf32>
    %168 = arith.addf %165, %167 : vector<16x128xf32>
    %c0_47 = arith.constant 0 : index
    %c0_48 = arith.constant 0 : index
    %169 = vector.load %arg9[%c0_47, %c0_48] : memref<16x128xf32, #tpu.memory_space<vmem>>, vector<16x128xf32>
    tpu.vector_store %arg9[%c0_47, %c0_48], %168 {strides = array<i32>} : memref<16x128xf32, #tpu.memory_space<vmem>>, vector<16x128xf32>,
    return
  }
}

</mosaic_0001>

<llo_original>
// kernel: tpu_custom_call.1
$region0: #{tpu_custom_call.1}
  #allocation0 [shape = 'u32[]', space=smem, size = 0x4, offset = 0x4, fixed_abs, tag = 'smem constant byte address 0x4 - core index']
  #allocation1 [shape = 'u32[72,128]{1,0:T(1,128)}', space=vmem, size = 0x9000, scoped, tag = 'internal scratch']
  %s0 = inlined_call_operand.vmem [shape: s32[128,1], index: 0, kind: input, shape index: {}]
  %s1 = inlined_call_operand.vmem [shape: bf16[128,64], index: 1, kind: input, shape index: {}]
  %s2 = inlined_call_operand.vmem [shape: bf16[64,128], index: 2, kind: input, shape index: {}]
  %s3 = inlined_call_operand.vmem [shape: bf16[32,128], index: 3, kind: input, shape index: {}]
  %s4 = inlined_call_operand.vmem [shape: f32[1,128], index: 4, kind: input, shape index: {}]
  %s5 = inlined_call_operand.vmem [shape: f32[32,128], index: 5, kind: input, shape index: {}]
  %s6 = inlined_call_operand.vmem [shape: f32[1,128], index: 6, kind: input, shape index: {}]
  %s7 = inlined_call_operand.vmem [shape: f32[16,32], index: 7, kind: input, shape index: {}]
  %s8 = inlined_call_operand.vmem [shape: f32[16,32], index: 8, kind: input, shape index: {}]
  %s9 = inlined_call_operand.hbm [shape: f32[16,128], index: 9, kind: output, shape index: {0}]
  %s10 = inlined_call_operand.hbm [shape: f32[16,32], index: 10, kind: output, shape index: {1}]
  %s11 = inlined_call_operand.hbm [shape: f32[16,32], index: 11, kind: output, shape index: {2}]
  %12 = xla_tuple %s9, %s10, %s11
  %s13 = sld [smem:[#allocation0]]
  $region62: #{tpu_custom_call.1} parent=0
    _
  %s15 = ssub.s32 1, %s13
  %s16 = scalar_select 0, %s15, %s13
  $region1: #{tpu_custom_call.1} parent=0
    #allocation2 [shape = 'u8[8192]{0}', space=vmem, size = 0x2000, scoped, tag = 'output window, operand 0, single buffered']
    #allocation3 [shape = 's32[1]{0}', space=sflag, size = 0x4, scoped, tag = 'scoped memory for tpu_custom_call.1']
    #allocation4 [shape = 'u8[8192]{0}', space=vmem, size = 0x2000, scoped, tag = 'output window, operand 1, single buffered']
    #allocation5 [shape = 's32[1]{0}', space=sflag, size = 0x4, scoped, tag = 'scoped memory for tpu_custom_call.1']
    #allocation6 [shape = 'u8[8192]{0}', space=vmem, size = 0x2000, scoped, tag = 'output window, operand 2, single buffered']
    %17 = vsyncpa [#allocation3], 0
    %18 = vsyncpa [#allocation5], 0
    // Predicated region
    $region2: #{tpu_custom_call.1} parent=1 // pred_check
      _
    $region3: #{tpu_custom_call.1} parent=1 // pred_check_branch
      %20 = sbr.rel (0) target = $region5
    $region4: #{tpu_custom_call.1} parent=1 // pred_region
      _
    $region5: #{tpu_custom_call.1} parent=1 // pred_fallthru
      _
    // Predicated region
    $region6: #{tpu_custom_call.1} parent=1 // pred_check
      _
    $region7: #{tpu_custom_call.1} parent=1 // pred_check_branch
      %22 = sbr.rel (0) target = $region9
    $region8: #{tpu_custom_call.1} parent=1 // pred_region
      _
    $region9: #{tpu_custom_call.1} parent=1 // pred_fallthru
      _
    // Predicated region
    $region10: #{tpu_custom_call.1} parent=1 // pred_check
      _
    $region11: #{tpu_custom_call.1} parent=1 // pred_check_branch
      %24 = sbr.rel (0) target = $region13
    $region12: #{tpu_custom_call.1} parent=1 // pred_region
      _
    $region13: #{tpu_custom_call.1} parent=1 // pred_fallthru
      _
    // Predicated region
    $region14: #{tpu_custom_call.1} parent=1 // pred_check
      _
    $region15: #{tpu_custom_call.1} parent=1 // pred_check_branch
      %26 = sbr.rel (0) target = $region17
    $region16: #{tpu_custom_call.1} parent=1 // pred_region
      _
    $region17: #{tpu_custom_call.1} parent=1 // pred_fallthru
      _
    // Predicated region
    $region18: #{tpu_custom_call.1} parent=1 // pred_check
      _
    $region19: #{tpu_custom_call.1} parent=1 // pred_check_branch
      %28 = sbr.rel (0) target = $region21
    $region20: #{tpu_custom_call.1} parent=1 // pred_region
      _
    $region21: #{tpu_custom_call.1} parent=1 // pred_fallthru
      _
    // Predicated region
    $region22: #{tpu_custom_call.1} parent=1 // pred_check
      _
    $region23: #{tpu_custom_call.1} parent=1 // pred_check_branch
      %30 = sbr.rel (0) target = $region25
    $region24: #{tpu_custom_call.1} parent=1 // pred_region
      _
    $region25: #{tpu_custom_call.1} parent=1 // pred_fallthru
      _
    // Predicated region
    $region26: #{tpu_custom_call.1} parent=1 // pred_check
      _
    $region27: #{tpu_custom_call.1} parent=1 // pred_check_branch
      %32 = sbr.rel (0) target = $region29
    $region28: #{tpu_custom_call.1} parent=1 // pred_region
      _
    $region29: #{tpu_custom_call.1} parent=1 // pred_fallthru
      _
    // Predicated region
    $region30: #{tpu_custom_call.1} parent=1 // pred_check
      _
    $region31: #{tpu_custom_call.1} parent=1 // pred_check_branch
      %34 = sbr.rel (0) target = $region33
    $region32: #{tpu_custom_call.1} parent=1 // pred_region
      _
    $region33: #{tpu_custom_call.1} parent=1 // pred_fallthru
      _
    // Predicated region
    $region34: #{tpu_custom_call.1} parent=1 // pred_check
      _
    $region35: #{tpu_custom_call.1} parent=1 // pred_check_branch
      %36 = sbr.rel (0) target = $region37
    $region36: #{tpu_custom_call.1} parent=1 // pred_region
      _
    $region37: #{tpu_custom_call.1} parent=1 // pred_fallthru
      _
    %v38 = vld [vmem:[%s0] sm:$0xff]
    %v39 = vld [vmem:[%s0 + $0x8] sm:$0xff]
    %v40 = vld [vmem:[%s0 + $0x10] sm:$0xff]
    %v41 = vld [vmem:[%s0 + $0x18] sm:$0xff]
    %v42 = vld [vmem:[%s0 + $0x20] sm:$0xff]
    %v43 = vld [vmem:[%s0 + $0x28] sm:$0xff]
    %v44 = vld [vmem:[%s0 + $0x30] sm:$0xff]
    %v45 = vld [vmem:[%s0 + $0x38] sm:$0xff]
    %v46 = vld [vmem:[%s0 + $0x40] sm:$0xff]
    %v47 = vld [vmem:[%s0 + $0x48] sm:$0xff]
    %v48 = vld [vmem:[%s0 + $0x50] sm:$0xff]
    %v49 = vld [vmem:[%s0 + $0x58] sm:$0xff]
    %v50 = vld [vmem:[%s0 + $0x60] sm:$0xff]
    %v51 = vld [vmem:[%s0 + $0x68] sm:$0xff]
    %v52 = vld [vmem:[%s0 + $0x70] sm:$0xff]
    %v53 = vld [vmem:[%s0 + $0x78] sm:$0xff]
    %v54 = vlaneseq
    %v55 = vand.u32 %v54, 127
    %56 = vset.pattern.permute.xlu0 0
    %57 = vperm.xlu0 %56, %v38
    %v58 = vpop.permute.xlu0 %57
    %59 = vset.pattern.permute.xlu0 0
    %60 = vperm.xlu0 %59, %v39
    %v61 = vpop.permute.xlu0 %60
    %62 = vset.pattern.permute.xlu0 0
    %63 = vperm.xlu0 %62, %v40
    %v64 = vpop.permute.xlu0 %63
    %65 = vset.pattern.permute.xlu0 0
    %66 = vperm.xlu0 %65, %v41
    %v67 = vpop.permute.xlu0 %66
    %68 = vset.pattern.permute.xlu0 0
    %69 = vperm.xlu0 %68, %v42
    %v70 = vpop.permute.xlu0 %69
    %71 = vset.pattern.permute.xlu0 0
    %72 = vperm.xlu0 %71, %v43
    %v73 = vpop.permute.xlu0 %72
    %74 = vset.pattern.permute.xlu0 0
    %75 = vperm.xlu0 %74, %v44
    %v76 = vpop.permute.xlu0 %75
    %77 = vset.pattern.permute.xlu0 0
    %78 = vperm.xlu0 %77, %v45
    %v79 = vpop.permute.xlu0 %78
    %80 = vset.pattern.permute.xlu0 0
    %81 = vperm.xlu0 %80, %v46
    %v82 = vpop.permute.xlu0 %81
    %83 = vset.pattern.permute.xlu0 0
    %84 = vperm.xlu0 %83, %v47
    %v85 = vpop.permute.xlu0 %84
    %86 = vset.pattern.permute.xlu0 0
    %87 = vperm.xlu0 %86, %v48
    %v88 = vpop.permute.xlu0 %87
    %89 = vset.pattern.permute.xlu0 0
    %90 = vperm.xlu0 %89, %v49
    %v91 = vpop.permute.xlu0 %90
    %92 = vset.pattern.permute.xlu0 0
    %93 = vperm.xlu0 %92, %v50
    %v94 = vpop.permute.xlu0 %93
    %95 = vset.pattern.permute.xlu0 0
    %96 = vperm.xlu0 %95, %v51
    %v97 = vpop.permute.xlu0 %96
    %98 = vset.pattern.permute.xlu0 0
    %99 = vperm.xlu0 %98, %v52
    %v100 = vpop.permute.xlu0 %99
    %101 = vset.pattern.permute.xlu0 0
    %102 = vperm.xlu0 %101, %v53
    %v103 = vpop.permute.xlu0 %102
    %vm104 = vcmp.eq.s32.totalorder %v58, %v55
    %vm105 = vcmp.eq.s32.totalorder %v61, %v55
    %vm106 = vcmp.eq.s32.totalorder %v64, %v55
    %vm107 = vcmp.eq.s32.totalorder %v67, %v55
    %vm108 = vcmp.eq.s32.totalorder %v70, %v55
    %vm109 = vcmp.eq.s32.totalorder %v73, %v55
    %vm110 = vcmp.eq.s32.totalorder %v76, %v55
    %vm111 = vcmp.eq.s32.totalorder %v79, %v55
    %vm112 = vcmp.eq.s32.totalorder %v82, %v55
    %vm113 = vcmp.eq.s32.totalorder %v85, %v55
    %vm114 = vcmp.eq.s32.totalorder %v88, %v55
    %vm115 = vcmp.eq.s32.totalorder %v91, %v55
    %vm116 = vcmp.eq.s32.totalorder %v94, %v55
    %vm117 = vcmp.eq.s32.totalorder %v97, %v55
    %vm118 = vcmp.eq.s32.totalorder %v100, %v55
    %vm119 = vcmp.eq.s32.totalorder %v103, %v55
    %v120 = vsel %vm104, 1, 0
    %v121 = vsel %vm105, 1, 0
    %v122 = vsel %vm106, 1, 0
    %v123 = vsel %vm107, 1, 0
    %v124 = vsel %vm108, 1, 0
    %v125 = vsel %vm109, 1, 0
    %v126 = vsel %vm110, 1, 0
    %v127 = vsel %vm111, 1, 0
    %v128 = vsel %vm112, 1, 0
    %v129 = vsel %vm113, 1, 0
    %v130 = vsel %vm114, 1, 0
    %v131 = vsel %vm115, 1, 0
    %v132 = vsel %vm116, 1, 0
    %v133 = vsel %vm117, 1, 0
    %v134 = vsel %vm118, 1, 0
    %v135 = vsel %vm119, 1, 0
    %v136 = vcvt.s32.f32 %v120
    %v137 = vcvt.s32.f32 %v121
    %v138 = vcvt.s32.f32 %v122
    %v139 = vcvt.s32.f32 %v123
    %v140 = vcvt.s32.f32 %v124
    %v141 = vcvt.s32.f32 %v125
    %v142 = vcvt.s32.f32 %v126
    %v143 = vcvt.s32.f32 %v127
    %v144 = vcvt.s32.f32 %v128
    %v145 = vcvt.s32.f32 %v129
    %v146 = vcvt.s32.f32 %v130
    %v147 = vcvt.s32.f32 %v131
    %v148 = vcvt.s32.f32 %v132
    %v149 = vcvt.s32.f32 %v133
    %v150 = vcvt.s32.f32 %v134
    %v151 = vcvt.s32.f32 %v135
    %v152 = vpack.c.bf16 %v137, %v136
    %v153 = vpack.c.bf16 %v139, %v138
    %v154 = vpack.c.bf16 %v141, %v140
    %v155 = vpack.c.bf16 %v143, %v142
    %v156 = vpack.c.bf16 %v145, %v144
    %v157 = vpack.c.bf16 %v147, %v146
    %v158 = vpack.c.bf16 %v149, %v148
    %v159 = vpack.c.bf16 %v151, %v150
    %v160 = vld [vmem:[%s1] sm:$0xf]
    %v161 = vld [vmem:[%s1 + $0x4] sm:$0xf]
    %v162 = vld [vmem:[%s1 + $0x8] sm:$0xf]
    %v163 = vld [vmem:[%s1 + $0xc] sm:$0xf]
    %v164 = vld [vmem:[%s1 + $0x10] sm:$0xf]
    %v165 = vld [vmem:[%s1 + $0x14] sm:$0xf]
    %v166 = vld [vmem:[%s1 + $0x18] sm:$0xf]
    %v167 = vld [vmem:[%s1 + $0x1c] sm:$0xf]
    %v168 = vld [vmem:[%s1 + $0x20] sm:$0xf]
    %v169 = vld [vmem:[%s1 + $0x24] sm:$0xf]
    %v170 = vld [vmem:[%s1 + $0x28] sm:$0xf]
    %v171 = vld [vmem:[%s1 + $0x2c] sm:$0xf]
    %v172 = vld [vmem:[%s1 + $0x30] sm:$0xf]
    %v173 = vld [vmem:[%s1 + $0x34] sm:$0xf]
    %v174 = vld [vmem:[%s1 + $0x38] sm:$0xf]
    %v175 = vld [vmem:[%s1 + $0x3c] sm:$0xf]
    %v192 = vunpack.c.l.b16 %v160
    %v193 = vunpack.c.l.b16 %v161
    %v194 = vunpack.c.l.b16 %v162
    %v195 = vunpack.c.l.b16 %v163
    %v196 = vunpack.c.l.b16 %v164
    %v197 = vunpack.c.l.b16 %v165
    %v198 = vunpack.c.l.b16 %v166
    %v199 = vunpack.c.l.b16 %v167
    %v200 = vunpack.c.l.b16 %v168
    %v201 = vunpack.c.l.b16 %v169
    %v202 = vunpack.c.l.b16 %v170
    %v203 = vunpack.c.l.b16 %v171
    %v204 = vunpack.c.l.b16 %v172
    %v205 = vunpack.c.l.b16 %v173
    %v206 = vunpack.c.l.b16 %v174
    %v207 = vunpack.c.l.b16 %v175
    %v208 = vpack.c.b16 %v193, %v192
    %v209 = vpack.c.b16 %v195, %v194
    %v210 = vpack.c.b16 %v197, %v196
    %v211 = vpack.c.b16 %v199, %v198
    %v212 = vpack.c.b16 %v201, %v200
    %v213 = vpack.c.b16 %v203, %v202
    %v214 = vpack.c.b16 %v205, %v204
    %v215 = vpack.c.b16 %v207, %v206
    %224 = vmatpush.bf16.msra.mxu0 %v215
    %225 = vmatpush.bf16.msra.mxu0 %v214
    %226 = vmatpush.bf16.msra.mxu0 %v213
    %227 = vmatpush.bf16.msra.mxu0 %v212
    %228 = vmatpush.bf16.msra.mxu0 %v211
    %229 = vmatpush.bf16.msra.mxu0 %v210
    %230 = vmatpush.bf16.msra.mxu0 %v209
    %231 = vmatpush.bf16.msra.mxu0 %v208
    %232 = vmatmul.bf16.gmra.mxu0 %v152
    %v233 = vpop.f32.mrf.mxu0
    %v234 = vadd.f32 0.0, %v233
    %v235 = vpop.f32.mrf.mxu0
    %v236 = vadd.f32 0.0, %v235
    %237 = vmatmul.bf16.gmra.mxu0 %v153
    %v238 = vpop.f32.mrf.mxu0
    %v239 = vadd.f32 0.0, %v238
    %v240 = vpop.f32.mrf.mxu0
    %v241 = vadd.f32 0.0, %v240
    %242 = vmatmul.bf16.gmra.mxu0 %v154
    %v243 = vpop.f32.mrf.mxu0
    %v244 = vadd.f32 0.0, %v243
    %v245 = vpop.f32.mrf.mxu0
    %v246 = vadd.f32 0.0, %v245
    %247 = vmatmul.bf16.gmra.mxu0 %v155
    %v248 = vpop.f32.mrf.mxu0
    %v249 = vadd.f32 0.0, %v248
    %v250 = vpop.f32.mrf.mxu0
    %v251 = vadd.f32 0.0, %v250
    %252 = vmatmul.bf16.gmra.mxu0 %v156
    %v253 = vpop.f32.mrf.mxu0
    %v254 = vadd.f32 0.0, %v253
    %v255 = vpop.f32.mrf.mxu0
    %v256 = vadd.f32 0.0, %v255
    %257 = vmatmul.bf16.gmra.mxu0 %v157
    %v258 = vpop.f32.mrf.mxu0
    %v259 = vadd.f32 0.0, %v258
    %v260 = vpop.f32.mrf.mxu0
    %v261 = vadd.f32 0.0, %v260
    %262 = vmatmul.bf16.gmra.mxu0 %v158
    %v263 = vpop.f32.mrf.mxu0
    %v264 = vadd.f32 0.0, %v263
    %v265 = vpop.f32.mrf.mxu0
    %v266 = vadd.f32 0.0, %v265
    %267 = vmatmul.bf16.gmra.mxu0 %v159
    %v268 = vpop.f32.mrf.mxu0
    %v269 = vadd.f32 0.0, %v268
    %v270 = vpop.f32.mrf.mxu0
    %v271 = vadd.f32 0.0, %v270
    %272 = vdwg.mxu0
    %v273 = vpack.c.bf16 %v236, %v234
    %v274 = vpack.c.bf16 %v241, %v239
    %v275 = vpack.c.bf16 %v246, %v244
    %v276 = vpack.c.bf16 %v251, %v249
    %v277 = vpack.c.bf16 %v256, %v254
    %v278 = vpack.c.bf16 %v261, %v259
    %v279 = vpack.c.bf16 %v266, %v264
    %v280 = vpack.c.bf16 %v271, %v269
    %v281 = vld [vmem:[%s2] sm:$0xf]
    %v282 = vld [vmem:[%s2 + $0x4] sm:$0xf]
    %v283 = vld [vmem:[%s2 + $0x8] sm:$0xf]
    %v284 = vld [vmem:[%s2 + $0xc] sm:$0xf]
    %v285 = vld [vmem:[%s2 + $0x10] sm:$0xf]
    %v286 = vld [vmem:[%s2 + $0x14] sm:$0xf]
    %v287 = vld [vmem:[%s2 + $0x18] sm:$0xf]
    %v288 = vld [vmem:[%s2 + $0x1c] sm:$0xf]
    %v289 = vld [vmem:[%s4] sm:$0x1]
    %v291 = vperm.slane %v289, 0
    %v301 = vunpack.c.l.b16 %v281
    %v302 = vunpack.c.l.b16 %v282
    %v303 = vunpack.c.l.b16 %v283
    %v304 = vunpack.c.l.b16 %v284
    %v305 = vunpack.c.l.b16 %v285
    %v306 = vunpack.c.l.b16 %v286
    %v307 = vunpack.c.l.b16 %v287
    %v308 = vunpack.c.l.b16 %v288
    %v309 = vpack.c.b16 %v302, %v301
    %v310 = vpack.c.b16 %v304, %v303
    %v311 = vpack.c.b16 %v306, %v305
    %v312 = vpack.c.b16 %v308, %v307
    %vm317 = vcmask 523264
    %v319 = vsel %vm317, %v273, 0
    %v322 = vsel %vm317, %v274, 0
    %v325 = vsel %vm317, %v275, 0
    %v328 = vsel %vm317, %v276, 0
    %v331 = vsel %vm317, %v277, 0
    %v334 = vsel %vm317, %v278, 0
    %v337 = vsel %vm317, %v279, 0
    %v340 = vsel %vm317, %v280, 0
    %342 = vmatpush.bf16.msra.mxu0 0
    %343 = vmatpush.bf16.msra.mxu0 0
    %344 = vmatpush.bf16.msra.mxu0 0
    %345 = vmatpush.bf16.msra.mxu0 0
    %346 = vmatpush.bf16.msra.mxu0 %v312
    %347 = vmatpush.bf16.msra.mxu0 %v311
    %348 = vmatpush.bf16.msra.mxu0 %v310
    %349 = vmatpush.bf16.msra.mxu0 %v309
    %350 = vmatmul.bf16.gmra.mxu0 %v319
    %v351 = vpop.f32.mrf.mxu0
    %v352 = vadd.f32 %v291, %v351
    %v353 = vpop.f32.mrf.mxu0
    %v354 = vadd.f32 %v291, %v353
    %355 = vmatmul.bf16.gmra.mxu0 %v322
    %v356 = vpop.f32.mrf.mxu0
    %v357 = vadd.f32 %v291, %v356
    %v358 = vpop.f32.mrf.mxu0
    %v359 = vadd.f32 %v291, %v358
    %360 = vmatmul.bf16.gmra.mxu0 %v325
    %v361 = vpop.f32.mrf.mxu0
    %v362 = vadd.f32 %v291, %v361
    %v363 = vpop.f32.mrf.mxu0
    %v364 = vadd.f32 %v291, %v363
    %365 = vmatmul.bf16.gmra.mxu0 %v328
    %v366 = vpop.f32.mrf.mxu0
    %v367 = vadd.f32 %v291, %v366
    %v368 = vpop.f32.mrf.mxu0
    %v369 = vadd.f32 %v291, %v368
    %370 = vmatmul.bf16.gmra.mxu0 %v331
    %v371 = vpop.f32.mrf.mxu0
    %v372 = vadd.f32 %v291, %v371
    %v373 = vpop.f32.mrf.mxu0
    %v374 = vadd.f32 %v291, %v373
    %375 = vmatmul.bf16.gmra.mxu0 %v334
    %v376 = vpop.f32.mrf.mxu0
    %v377 = vadd.f32 %v291, %v376
    %v378 = vpop.f32.mrf.mxu0
    %v379 = vadd.f32 %v291, %v378
    %380 = vmatmul.bf16.gmra.mxu0 %v337
    %v381 = vpop.f32.mrf.mxu0
    %v382 = vadd.f32 %v291, %v381
    %v383 = vpop.f32.mrf.mxu0
    %v384 = vadd.f32 %v291, %v383
    %385 = vmatmul.bf16.gmra.mxu0 %v340
    %v386 = vpop.f32.mrf.mxu0
    %v387 = vadd.f32 %v291, %v386
    %v388 = vpop.f32.mrf.mxu0
    %v389 = vadd.f32 %v291, %v388
    %390 = vdwg.mxu0
    %v391 = vld [vmem:[%s3] sm:$0xf]
    %v392 = vld [vmem:[%s3 + $0x4] sm:$0xf]
    %v393 = vld [vmem:[%s3 + $0x8] sm:$0xf]
    %v394 = vld [vmem:[%s3 + $0xc] sm:$0xf]
    %v395 = vld [vmem:[%s7] sm:$0xff]
    %v396 = vld [vmem:[%s7 + $0x8] sm:$0xff]
    %v397 = vld [vmem:[%s8] sm:$0xff]
    %v398 = vld [vmem:[%s8 + $0x8] sm:$0xff]
    %v399 = vpack.c.bf16 %v396, %v395
    %v404 = vunpack.c.l.b16 %v391
    %v405 = vunpack.c.l.b16 %v392
    %v406 = vunpack.c.l.b16 %v393
    %v407 = vunpack.c.l.b16 %v394
    %v408 = vpack.c.b16 %v405, %v404
    %v409 = vpack.c.b16 %v407, %v406
    %vm412 = vcmask 261120
    %v414 = vsel %vm412, %v399, 0
    %416 = vmatpush.bf16.msra.mxu0 0
    %417 = vmatpush.bf16.msra.mxu0 0
    %418 = vmatpush.bf16.msra.mxu0 0
    %419 = vmatpush.bf16.msra.mxu0 0
    %420 = vmatpush.bf16.msra.mxu0 0
    %421 = vmatpush.bf16.msra.mxu0 0
    %422 = vmatpush.bf16.msra.mxu0 %v409
    %423 = vmatpush.bf16.msra.mxu0 %v408
    %424 = vmatmul.bf16.gmra.mxu0 %v414
    %v425 = vpop.f32.mrf.mxu0
    %v426 = vadd.f32 0.0, %v425
    %v427 = vpop.f32.mrf.mxu0
    %v428 = vadd.f32 0.0, %v427
    %429 = vdwg.mxu0
    %v430 = vadd.f32 %v352, %v426
    %v431 = vadd.f32 %v354, %v428
    %v432 = vtanh.pop %v430
    %v433 = vtanh.pop %v431
    %v434 = vmul.f32 %v432, 0.5
    %v435 = vmul.f32 %v433, 0.5
    %v436 = vadd.f32 %v434, 0.5
    %v437 = vadd.f32 %v435, 0.5
    %440 = vrot.lane.b32.xlu0 %v397, 32
    %v441 = vpop.permute.xlu0 %440
    %442 = vrot.lane.b32.xlu0 %v398, 32
    %v443 = vpop.permute.xlu0 %442
    %v446 = vmul.f32 %v436, %v441
    %v447 = vmul.f32 %v437, %v443
    %450 = vrot.lane.b32.xlu0 %v432, 64
    %v451 = vpop.permute.xlu0 %450
    %452 = vrot.lane.b32.xlu0 %v433, 64
    %v453 = vpop.permute.xlu0 %452
    %v456 = vmul.f32 %v436, %v451
    %v457 = vmul.f32 %v437, %v453
    %460 = vrot.lane.b32.xlu0 %v456, 32
    %v461 = vpop.permute.xlu0 %460
    %462 = vrot.lane.b32.xlu0 %v457, 32
    %v463 = vpop.permute.xlu0 %462
    %v466 = vadd.f32 %v446, %v461
    %v467 = vadd.f32 %v447, %v463
    %v468 = vtanh.pop %v466
    %v469 = vtanh.pop %v467
    %472 = vrot.lane.b32.xlu0 %v468, 64
    %v473 = vpop.permute.xlu0 %472
    %474 = vrot.lane.b32.xlu0 %v469, 64
    %v475 = vpop.permute.xlu0 %474
    %v478 = vmul.f32 %v436, %v473
    %v479 = vmul.f32 %v437, %v475
    %v480 = vpack.c.bf16 %v479, %v478
    %482 = vrot.lane.b32.xlu0 %v480, 32
    %v483 = vpop.permute.xlu0 %482
    %v485 = vsel %vm412, %v483, 0
    %487 = vmatpush.bf16.msra.mxu0 0
    %488 = vmatpush.bf16.msra.mxu0 0
    %489 = vmatpush.bf16.msra.mxu0 0
    %490 = vmatpush.bf16.msra.mxu0 0
    %491 = vmatpush.bf16.msra.mxu0 0
    %492 = vmatpush.bf16.msra.mxu0 0
    %493 = vmatpush.bf16.msra.mxu0 %v409
    %494 = vmatpush.bf16.msra.mxu0 %v408
    %495 = vmatmul.bf16.gmra.mxu0 %v485
    %v496 = vpop.f32.mrf.mxu0
    %v497 = vadd.f32 0.0, %v496
    %v498 = vpop.f32.mrf.mxu0
    %v499 = vadd.f32 0.0, %v498
    %500 = vdwg.mxu0
    %v501 = vadd.f32 %v357, %v497
    %v502 = vadd.f32 %v359, %v499
    %v503 = vtanh.pop %v501
    %v504 = vtanh.pop %v502
    %v505 = vmul.f32 %v503, 0.5
    %v506 = vmul.f32 %v504, 0.5
    %v507 = vadd.f32 %v505, 0.5
    %v508 = vadd.f32 %v506, 0.5
    %v509 = vmul.f32 %v507, %v466
    %v510 = vmul.f32 %v508, %v467
    %513 = vrot.lane.b32.xlu0 %v503, 64
    %v514 = vpop.permute.xlu0 %513
    %515 = vrot.lane.b32.xlu0 %v504, 64
    %v516 = vpop.permute.xlu0 %515
    %v519 = vmul.f32 %v507, %v514
    %v520 = vmul.f32 %v508, %v516
    %523 = vrot.lane.b32.xlu0 %v519, 32
    %v524 = vpop.permute.xlu0 %523
    %525 = vrot.lane.b32.xlu0 %v520, 32
    %v526 = vpop.permute.xlu0 %525
    %v529 = vadd.f32 %v509, %v524
    %v530 = vadd.f32 %v510, %v526
    %v531 = vtanh.pop %v529
    %v532 = vtanh.pop %v530
    %535 = vrot.lane.b32.xlu0 %v531, 64
    %v536 = vpop.permute.xlu0 %535
    %537 = vrot.lane.b32.xlu0 %v532, 64
    %v538 = vpop.permute.xlu0 %537
    %v541 = vmul.f32 %v507, %v536
    %v542 = vmul.f32 %v508, %v538
    %v543 = vpack.c.bf16 %v542, %v541
    %545 = vrot.lane.b32.xlu0 %v543, 32
    %v546 = vpop.permute.xlu0 %545
    %v548 = vsel %vm412, %v546, 0
    %550 = vmatpush.bf16.msra.mxu0 0
    %551 = vmatpush.bf16.msra.mxu0 0
    %552 = vmatpush.bf16.msra.mxu0 0
    %553 = vmatpush.bf16.msra.mxu0 0
    %554 = vmatpush.bf16.msra.mxu0 0
    %555 = vmatpush.bf16.msra.mxu0 0
    %556 = vmatpush.bf16.msra.mxu0 %v409
    %557 = vmatpush.bf16.msra.mxu0 %v408
    %558 = vmatmul.bf16.gmra.mxu0 %v548
    %v559 = vpop.f32.mrf.mxu0
    %v560 = vadd.f32 0.0, %v559
    %v561 = vpop.f32.mrf.mxu0
    %v562 = vadd.f32 0.0, %v561
    %563 = vdwg.mxu0
    %v564 = vadd.f32 %v362, %v560
    %v565 = vadd.f32 %v364, %v562
    %v566 = vtanh.pop %v564
    %v567 = vtanh.pop %v565
    %v568 = vmul.f32 %v566, 0.5
    %v569 = vmul.f32 %v567, 0.5
    %v570 = vadd.f32 %v568, 0.5
    %v571 = vadd.f32 %v569, 0.5
    %v572 = vmul.f32 %v570, %v529
    %v573 = vmul.f32 %v571, %v530
    %576 = vrot.lane.b32.xlu0 %v566, 64
    %v577 = vpop.permute.xlu0 %576
    %578 = vrot.lane.b32.xlu0 %v567, 64
    %v579 = vpop.permute.xlu0 %578
    %v582 = vmul.f32 %v570, %v577
    %v583 = vmul.f32 %v571, %v579
    %586 = vrot.lane.b32.xlu0 %v582, 32
    %v587 = vpop.permute.xlu0 %586
    %588 = vrot.lane.b32.xlu0 %v583, 32
    %v589 = vpop.permute.xlu0 %588
    %v592 = vadd.f32 %v572, %v587
    %v593 = vadd.f32 %v573, %v589
    %v594 = vtanh.pop %v592
    %v595 = vtanh.pop %v593
    %598 = vrot.lane.b32.xlu0 %v594, 64
    %v599 = vpop.permute.xlu0 %598
    %600 = vrot.lane.b32.xlu0 %v595, 64
    %v601 = vpop.permute.xlu0 %600
    %v604 = vmul.f32 %v570, %v599
    %v605 = vmul.f32 %v571, %v601
    %v606 = vpack.c.bf16 %v605, %v604
    %608 = vrot.lane.b32.xlu0 %v606, 32
    %v609 = vpop.permute.xlu0 %608
    %v611 = vsel %vm412, %v609, 0
    %613 = vmatpush.bf16.msra.mxu0 0
    %614 = vmatpush.bf16.msra.mxu0 0
    %615 = vmatpush.bf16.msra.mxu0 0
    %616 = vmatpush.bf16.msra.mxu0 0
    %617 = vmatpush.bf16.msra.mxu0 0
    %618 = vmatpush.bf16.msra.mxu0 0
    %619 = vmatpush.bf16.msra.mxu0 %v409
    %620 = vmatpush.bf16.msra.mxu0 %v408
    %621 = vmatmul.bf16.gmra.mxu0 %v611
    %v622 = vpop.f32.mrf.mxu0
    %v623 = vadd.f32 0.0, %v622
    %v624 = vpop.f32.mrf.mxu0
    %v625 = vadd.f32 0.0, %v624
    %626 = vdwg.mxu0
    %v627 = vadd.f32 %v367, %v623
    %v628 = vadd.f32 %v369, %v625
    %v629 = vtanh.pop %v627
    %v630 = vtanh.pop %v628
    %v631 = vmul.f32 %v629, 0.5
    %v632 = vmul.f32 %v630, 0.5
    %v633 = vadd.f32 %v631, 0.5
    %v634 = vadd.f32 %v632, 0.5
    %v635 = vmul.f32 %v633, %v592
    %v636 = vmul.f32 %v634, %v593
    %639 = vrot.lane.b32.xlu0 %v629, 64
    %v640 = vpop.permute.xlu0 %639
    %641 = vrot.lane.b32.xlu0 %v630, 64
    %v642 = vpop.permute.xlu0 %641
    %v645 = vmul.f32 %v633, %v640
    %v646 = vmul.f32 %v634, %v642
    %649 = vrot.lane.b32.xlu0 %v645, 32
    %v650 = vpop.permute.xlu0 %649
    %651 = vrot.lane.b32.xlu0 %v646, 32
    %v652 = vpop.permute.xlu0 %651
    %v655 = vadd.f32 %v635, %v650
    %v656 = vadd.f32 %v636, %v652
    %v657 = vtanh.pop %v655
    %v658 = vtanh.pop %v656
    %661 = vrot.lane.b32.xlu0 %v657, 64
    %v662 = vpop.permute.xlu0 %661
    %663 = vrot.lane.b32.xlu0 %v658, 64
    %v664 = vpop.permute.xlu0 %663
    %v667 = vmul.f32 %v633, %v662
    %v668 = vmul.f32 %v634, %v664
    %v669 = vpack.c.bf16 %v668, %v667
    %671 = vrot.lane.b32.xlu0 %v669, 32
    %v672 = vpop.permute.xlu0 %671
    %v674 = vsel %vm412, %v672, 0
    %676 = vmatpush.bf16.msra.mxu0 0
    %677 = vmatpush.bf16.msra.mxu0 0
    %678 = vmatpush.bf16.msra.mxu0 0
    %679 = vmatpush.bf16.msra.mxu0 0
    %680 = vmatpush.bf16.msra.mxu0 0
    %681 = vmatpush.bf16.msra.mxu0 0
    %682 = vmatpush.bf16.msra.mxu0 %v409
    %683 = vmatpush.bf16.msra.mxu0 %v408
    %684 = vmatmul.bf16.gmra.mxu0 %v674
    %v685 = vpop.f32.mrf.mxu0
    %v686 = vadd.f32 0.0, %v685
    %v687 = vpop.f32.mrf.mxu0
    %v688 = vadd.f32 0.0, %v687
    %689 = vdwg.mxu0
    %v690 = vadd.f32 %v372, %v686
    %v691 = vadd.f32 %v374, %v688
    %v692 = vtanh.pop %v690
    %v693 = vtanh.pop %v691
    %v694 = vmul.f32 %v692, 0.5
    %v695 = vmul.f32 %v693, 0.5
    %v696 = vadd.f32 %v694, 0.5
    %v697 = vadd.f32 %v695, 0.5
    %v698 = vmul.f32 %v696, %v655
    %v699 = vmul.f32 %v697, %v656
    %702 = vrot.lane.b32.xlu0 %v692, 64
    %v703 = vpop.permute.xlu0 %702
    %704 = vrot.lane.b32.xlu0 %v693, 64
    %v705 = vpop.permute.xlu0 %704
    %v708 = vmul.f32 %v696, %v703
    %v709 = vmul.f32 %v697, %v705
    %712 = vrot.lane.b32.xlu0 %v708, 32
    %v713 = vpop.permute.xlu0 %712
    %714 = vrot.lane.b32.xlu0 %v709, 32
    %v715 = vpop.permute.xlu0 %714
    %v718 = vadd.f32 %v698, %v713
    %v719 = vadd.f32 %v699, %v715
    %v720 = vtanh.pop %v718
    %v721 = vtanh.pop %v719
    %724 = vrot.lane.b32.xlu0 %v720, 64
    %v725 = vpop.permute.xlu0 %724
    %726 = vrot.lane.b32.xlu0 %v721, 64
    %v727 = vpop.permute.xlu0 %726
    %v730 = vmul.f32 %v696, %v725
    %v731 = vmul.f32 %v697, %v727
    %v732 = vpack.c.bf16 %v731, %v730
    %734 = vrot.lane.b32.xlu0 %v732, 32
    %v735 = vpop.permute.xlu0 %734
    %v737 = vsel %vm412, %v735, 0
    %739 = vmatpush.bf16.msra.mxu0 0
    %740 = vmatpush.bf16.msra.mxu0 0
    %741 = vmatpush.bf16.msra.mxu0 0
    %742 = vmatpush.bf16.msra.mxu0 0
    %743 = vmatpush.bf16.msra.mxu0 0
    %744 = vmatpush.bf16.msra.mxu0 0
    %745 = vmatpush.bf16.msra.mxu0 %v409
    %746 = vmatpush.bf16.msra.mxu0 %v408
    %747 = vmatmul.bf16.gmra.mxu0 %v737
    %v748 = vpop.f32.mrf.mxu0
    %v749 = vadd.f32 0.0, %v748
    %v750 = vpop.f32.mrf.mxu0
    %v751 = vadd.f32 0.0, %v750
    %752 = vdwg.mxu0
    %v753 = vadd.f32 %v377, %v749
    %v754 = vadd.f32 %v379, %v751
    %v755 = vtanh.pop %v753
    %v756 = vtanh.pop %v754
    %v757 = vmul.f32 %v755, 0.5
    %v758 = vmul.f32 %v756, 0.5
    %v759 = vadd.f32 %v757, 0.5
    %v760 = vadd.f32 %v758, 0.5
    %v761 = vmul.f32 %v759, %v718
    %v762 = vmul.f32 %v760, %v719
    %765 = vrot.lane.b32.xlu0 %v755, 64
    %v766 = vpop.permute.xlu0 %765
    %767 = vrot.lane.b32.xlu0 %v756, 64
    %v768 = vpop.permute.xlu0 %767
    %v771 = vmul.f32 %v759, %v766
    %v772 = vmul.f32 %v760, %v768
    %775 = vrot.lane.b32.xlu0 %v771, 32
    %v776 = vpop.permute.xlu0 %775
    %777 = vrot.lane.b32.xlu0 %v772, 32
    %v778 = vpop.permute.xlu0 %777
    %v781 = vadd.f32 %v761, %v776
    %v782 = vadd.f32 %v762, %v778
    %v783 = vtanh.pop %v781
    %v784 = vtanh.pop %v782
    %787 = vrot.lane.b32.xlu0 %v783, 64
    %v788 = vpop.permute.xlu0 %787
    %789 = vrot.lane.b32.xlu0 %v784, 64
    %v790 = vpop.permute.xlu0 %789
    %v793 = vmul.f32 %v759, %v788
    %v794 = vmul.f32 %v760, %v790
    %v795 = vpack.c.bf16 %v794, %v793
    %797 = vrot.lane.b32.xlu0 %v795, 32
    %v798 = vpop.permute.xlu0 %797
    %v800 = vsel %vm412, %v798, 0
    %802 = vmatpush.bf16.msra.mxu0 0
    %803 = vmatpush.bf16.msra.mxu0 0
    %804 = vmatpush.bf16.msra.mxu0 0
    %805 = vmatpush.bf16.msra.mxu0 0
    %806 = vmatpush.bf16.msra.mxu0 0
    %807 = vmatpush.bf16.msra.mxu0 0
    %808 = vmatpush.bf16.msra.mxu0 %v409
    %809 = vmatpush.bf16.msra.mxu0 %v408
    %810 = vmatmul.bf16.gmra.mxu0 %v800
    %v811 = vpop.f32.mrf.mxu0
    %v812 = vadd.f32 0.0, %v811
    %v813 = vpop.f32.mrf.mxu0
    %v814 = vadd.f32 0.0, %v813
    %815 = vdwg.mxu0
    %v816 = vadd.f32 %v382, %v812
    %v817 = vadd.f32 %v384, %v814
    %v818 = vtanh.pop %v816
    %v819 = vtanh.pop %v817
    %v820 = vmul.f32 %v818, 0.5
    %v821 = vmul.f32 %v819, 0.5
    %v822 = vadd.f32 %v820, 0.5
    %v823 = vadd.f32 %v821, 0.5
    %v824 = vmul.f32 %v822, %v781
    %v825 = vmul.f32 %v823, %v782
    %828 = vrot.lane.b32.xlu0 %v818, 64
    %v829 = vpop.permute.xlu0 %828
    %830 = vrot.lane.b32.xlu0 %v819, 64
    %v831 = vpop.permute.xlu0 %830
    %v834 = vmul.f32 %v822, %v829
    %v835 = vmul.f32 %v823, %v831
    %838 = vrot.lane.b32.xlu0 %v834, 32
    %v839 = vpop.permute.xlu0 %838
    %840 = vrot.lane.b32.xlu0 %v835, 32
    %v841 = vpop.permute.xlu0 %840
    %v844 = vadd.f32 %v824, %v839
    %v845 = vadd.f32 %v825, %v841
    %v846 = vtanh.pop %v844
    %v847 = vtanh.pop %v845
    %850 = vrot.lane.b32.xlu0 %v846, 64
    %v851 = vpop.permute.xlu0 %850
    %852 = vrot.lane.b32.xlu0 %v847, 64
    %v853 = vpop.permute.xlu0 %852
    %v856 = vmul.f32 %v822, %v851
    %v857 = vmul.f32 %v823, %v853
    %v858 = vpack.c.bf16 %v857, %v856
    %860 = vrot.lane.b32.xlu0 %v858, 32
    %v861 = vpop.permute.xlu0 %860
    %v863 = vsel %vm412, %v861, 0
    %865 = vmatpush.bf16.msra.mxu0 0
    %866 = vmatpush.bf16.msra.mxu0 0
    %867 = vmatpush.bf16.msra.mxu0 0
    %868 = vmatpush.bf16.msra.mxu0 0
    %869 = vmatpush.bf16.msra.mxu0 0
    %870 = vmatpush.bf16.msra.mxu0 0
    %871 = vmatpush.bf16.msra.mxu0 %v409
    %872 = vmatpush.bf16.msra.mxu0 %v408
    %873 = vmatmul.bf16.gmra.mxu0 %v863
    %v874 = vpop.f32.mrf.mxu0
    %v875 = vadd.f32 0.0, %v874
    %v876 = vpop.f32.mrf.mxu0
    %v877 = vadd.f32 0.0, %v876
    %878 = vdwg.mxu0
    %v879 = vadd.f32 %v387, %v875
    %v880 = vadd.f32 %v389, %v877
    %v881 = vtanh.pop %v879
    %v882 = vtanh.pop %v880
    %v883 = vmul.f32 %v881, 0.5
    %v884 = vmul.f32 %v882, 0.5
    %v885 = vadd.f32 %v883, 0.5
    %v886 = vadd.f32 %v884, 0.5
    %v887 = vmul.f32 %v885, %v844
    %v888 = vmul.f32 %v886, %v845
    %891 = vrot.lane.b32.xlu0 %v881, 64
    %v892 = vpop.permute.xlu0 %891
    %893 = vrot.lane.b32.xlu0 %v882, 64
    %v894 = vpop.permute.xlu0 %893
    %v897 = vmul.f32 %v885, %v892
    %v898 = vmul.f32 %v886, %v894
    %901 = vrot.lane.b32.xlu0 %v897, 32
    %v902 = vpop.permute.xlu0 %901
    %903 = vrot.lane.b32.xlu0 %v898, 32
    %v904 = vpop.permute.xlu0 %903
    %v907 = vadd.f32 %v887, %v902
    %v908 = vadd.f32 %v888, %v904
    %v909 = vtanh.pop %v907
    %v910 = vtanh.pop %v908
    %913 = vrot.lane.b32.xlu0 %v909, 64
    %v914 = vpop.permute.xlu0 %913
    %915 = vrot.lane.b32.xlu0 %v910, 64
    %v916 = vpop.permute.xlu0 %915
    %v919 = vmul.f32 %v885, %v914
    %v920 = vmul.f32 %v886, %v916
    %923 = vrot.lane.b32.xlu0 %v919, 32
    %v924 = vpop.permute.xlu0 %923
    %925 = vrot.lane.b32.xlu0 %v920, 32
    %v926 = vpop.permute.xlu0 %925
    %929 = vst.msk [vmem:[#allocation4] sm:$0xff] %vm412, %v924
    %930 = vst.msk [vmem:[#allocation4 + $0x8] sm:$0xff] %vm412, %v926
    %933 = vrot.lane.b32.xlu0 %v907, 96
    %v934 = vpop.permute.xlu0 %933
    %935 = vrot.lane.b32.xlu0 %v908, 96
    %v936 = vpop.permute.xlu0 %935
    %939 = vst.msk [vmem:[#allocation6] sm:$0xff] %vm412, %v934
    %940 = vst.msk [vmem:[#allocation6 + $0x8] sm:$0xff] %vm412, %v936
    %v941 = vld [vmem:[%s5] sm:$0xff]
    %v942 = vld [vmem:[%s5 + $0x8] sm:$0xff]
    %v943 = vld [vmem:[%s5 + $0x10] sm:$0xff]
    %v944 = vld [vmem:[%s5 + $0x18] sm:$0xff]
    %v945 = vld [vmem:[%s6] sm:$0x1]
    %v947 = vperm.slane %v945, 0
    %v949 = vsel %vm412, %v924, 0
    %v951 = vsel %vm412, %v926, 0
    %953 = vmatpush.msra.mxu0 0.0
    %954 = vmatpush.msra.mxu0 0.0
    %955 = vmatpush.msra.mxu0 0.0
    %956 = vmatpush.msra.mxu0 0.0
    %957 = vmatpush.msra.mxu0 0.0
    %958 = vmatpush.msra.mxu0 0.0
    %959 = vmatpush.msra.mxu0 0.0
    %960 = vmatpush.msra.mxu0 0.0
    %961 = vmatpush.msra.mxu0 0.0
    %962 = vmatpush.msra.mxu0 0.0
    %963 = vmatpush.msra.mxu0 0.0
    %964 = vmatpush.msra.mxu0 0.0
    %965 = vmatpush.msra.mxu0 %v944
    %966 = vmatpush.msra.mxu0 %v943
    %967 = vmatpush.msra.mxu0 %v942
    %968 = vmatpush.msra.mxu0 %v941
    %969 = vmatmul.f32.gmra.mxu0 %v949
    %v970 = vpop.f32.mrf.mxu0
    %v971 = vadd.f32 %v947, %v970
    %972 = vmatmul.f32.gmra.mxu0 %v951
    %v973 = vpop.f32.mrf.mxu0
    %v974 = vadd.f32 %v947, %v973
    %975 = vdwg.mxu0
    %976 = vst [vmem:[#allocation2] sm:$0xff] %v971
    %977 = vst [vmem:[#allocation2 + $0x8] sm:$0xff] %v974
    // Predicated region
    $region38: #{tpu_custom_call.1} parent=1 // pred_check
      _
    $region39: #{tpu_custom_call.1} parent=1 // pred_check_branch
      %979 = sbr.rel (0) target = $region41
    $region40: #{tpu_custom_call.1} parent=1 // pred_region
      %981 = vsyncadd [#allocation3], 0
      %s982 = sshll.u32 [#allocation2], 4
      %s983 = int_to_ptr.vmem [resolvable:$true] %s982
      %s984 = sshll.u32 %s9, 4
      %s985 = int_to_ptr.hbm [resolvable:$true] %s984
      %990 = dma.vmem_to_hbm [thread:$0]  %s983, 256, %s985, [#allocation3], 128, 128, 8
    $region41: #{tpu_custom_call.1} parent=1 // pred_fallthru
      _
    // Predicated region
    $region42: #{tpu_custom_call.1} parent=1 // pred_check
      _
    $region43: #{tpu_custom_call.1} parent=1 // pred_check_branch
      %992 = sbr.rel (0) target = $region45
    $region44: #{tpu_custom_call.1} parent=1 // pred_region
      %994 = vsyncadd [#allocation5], 0
      %s995 = sshll.u32 [#allocation4], 4
      %s996 = int_to_ptr.vmem [resolvable:$true] %s995
      %s997 = sshll.u32 %s10, 4
      %s998 = int_to_ptr.hbm [resolvable:$true] %s997
      %1003 = dma.vmem_to_hbm [thread:$0]  %s996, 256, %s998, [#allocation5], 128, 128, 8
    $region45: #{tpu_custom_call.1} parent=1 // pred_fallthru
      _
    // Predicated region
    $region46: #{tpu_custom_call.1} parent=1 // pred_check
      _
    $region47: #{tpu_custom_call.1} parent=1 // pred_check_branch
      %1005 = sbr.rel (0) target = $region49
    $region48: #{tpu_custom_call.1} parent=1 // pred_region
      %1007 = vsyncadd [#allocation5], 0
      %s1008 = sshll.u32 [#allocation6], 4
      %s1009 = int_to_ptr.vmem [resolvable:$true] %s1008
      %s1010 = sshll.u32 %s11, 4
      %s1011 = int_to_ptr.hbm [resolvable:$true] %s1010
      %1016 = dma.vmem_to_hbm [thread:$0]  %s1009, 256, %s1011, [#allocation5], 128, 128, 8
    $region49: #{tpu_custom_call.1} parent=1 // pred_fallthru
      _
    // Predicated region
    $region50: #{tpu_custom_call.1} parent=1 // pred_check
      _
    $region51: #{tpu_custom_call.1} parent=1 // pred_check_branch
      %1018 = sbr.rel (0) target = $region53
    $region52: #{tpu_custom_call.1} parent=1 // pred_region
      %1020 = dma.done [#allocation3], 256
    $region53: #{tpu_custom_call.1} parent=1 // pred_fallthru
      _
    // Predicated region
    $region54: #{tpu_custom_call.1} parent=1 // pred_check
      _
    $region55: #{tpu_custom_call.1} parent=1 // pred_check_branch
      %1022 = sbr.rel (0) target = $region57
    $region56: #{tpu_custom_call.1} parent=1 // pred_region
      %1024 = dma.done [#allocation5], 256
    $region57: #{tpu_custom_call.1} parent=1 // pred_fallthru
      _
    // Predicated region
    $region58: #{tpu_custom_call.1} parent=1 // pred_check
      _
    $region59: #{tpu_custom_call.1} parent=1 // pred_check_branch
      %1026 = sbr.rel (0) target = $region61
    $region60: #{tpu_custom_call.1} parent=1 // pred_region
      %1028 = dma.done [#allocation5], 256
    $region61: #{tpu_custom_call.1} parent=1 // pred_fallthru
      _
    %1029 = vsyncpa [#allocation3], 1
    %1030 = vsyncpa [#allocation5], 1

</llo_original>
